<compile_context>
chip_gen: v7x
topology: tpu7x:2x2x1
jax: 0.10.0
libtpu: 0.0.40
codegen_flags: <defaults>
</compile_context>

<pallas_src>
import jax
import jax.numpy as jnp
from jax import lax
from jax.experimental import pallas as pl
from jax.experimental.pallas import tpu as pltpu


def lstm_tagger_kernel(ids_ref,        # SMEM scalar-prefetch: (S,) int32 token ids
                       emb_ref,        # (V, E)
                       w_ih_t_ref,     # (E, 4H)  = W_ih^T
                       w_hh_t_ref,     # (H, 4H)  = W_hh^T
                       b_ref,          # (1, 4H)  = b_ih + b_hh
                       w_out_t_ref,    # (H, Tp)  = W_out^T, lane-padded (zeros)
                       b_out_ref,      # (1, Tp)  padded lanes hold -1e30
                       out_ref):       # (S, Tp)  lane-dense log-softmax slab
    S = out_ref.shape[0]
    H = w_hh_t_ref.shape[0]

    # ---- 1. Gather all S embedding rows once (outside the recurrence). ----
    x = jnp.concatenate(
        [emb_ref[pl.ds(ids_ref[t], 1), :] for t in range(S)], axis=0)       # (S, E)

    # ---- 2. Input projection + bias for every timestep: ONE MXU matmul. ----
    gx = (jnp.dot(x, w_ih_t_ref[...], preferred_element_type=jnp.float32)
          + b_ref[...])                                                      # (S, 4H)

    # Hoist the recurrent weight load out of the serial loop.
    w_hh_t = w_hh_t_ref[...]                                                 # (H, 4H)

    # ---- 3. Serial recurrence, fully unrolled (S static & small). --------
    h = jnp.zeros((1, H), jnp.float32)
    c = jnp.zeros((1, H), jnp.float32)
    hs = []
    for t in range(S):
        gates = gx[t:t + 1, :] + jnp.dot(h, w_hh_t,
                                         preferred_element_type=jnp.float32)  # (1, 4H)
        # Two full-vreg EUP passes instead of four sub-vreg ones.
        sg = jax.nn.sigmoid(gates)
        th = jnp.tanh(gates)
        i_g = sg[:, 0 * H:1 * H]
        f_g = sg[:, 1 * H:2 * H]
        g_g = th[:, 2 * H:3 * H]
        o_g = sg[:, 3 * H:4 * H]
        c = f_g * c + i_g * g_g
        h = o_g * jnp.tanh(c)
        hs.append(h)

    # ---- 4. Output projection + log_softmax, batched over all timesteps. --
    h_seq = jnp.concatenate(hs, axis=0)                                      # (S, H)
    logits = (jnp.dot(h_seq, w_out_t_ref[...],
                      preferred_element_type=jnp.float32)
              + b_out_ref[...])                                              # (S, Tp)
    # Padded lanes carry a -1e30 bias -> exp() underflows to 0, so the
    # full-128-lane log_softmax equals the T-lane log_softmax on real lanes.
    m = jnp.max(logits, axis=-1, keepdims=True)
    lse = jnp.log(jnp.sum(jnp.exp(logits - m), axis=-1, keepdims=True)) + m
    out_ref[...] = logits - lse                                              # one unmasked store


@jax.jit
def lstm_tagger_forward(sentence, emb, w_ih, w_hh, b_ih, b_hh, w_out, b_out):
    S = sentence.shape[0]
    V, E = emb.shape
    H = w_hh.shape[1]
    T = w_out.shape[0]
    T_pad = 128 * pl.cdiv(T, 128)     # lane-dense output slab

    # Glue (layout plumbing only): pre-transpose weights, combine biases,
    # lane-pad the output projection.
    w_ih_t = jnp.asarray(w_ih, jnp.float32).T                        # (E, 4H)
    w_hh_t = jnp.asarray(w_hh, jnp.float32).T                        # (H, 4H)
    b = (b_ih + b_hh).reshape(1, 4 * H).astype(jnp.float32)          # (1, 4H)
    w_out_t = jnp.zeros((H, T_pad), jnp.float32).at[:, :T].set(
        jnp.asarray(w_out, jnp.float32).T)                           # (H, Tp)
    b_o = jnp.full((1, T_pad), -1e30, jnp.float32).at[0, :T].set(
        jnp.asarray(b_out, jnp.float32))                             # (1, Tp)

    full = lambda shape: pl.BlockSpec(shape, lambda i, ids: (0, 0))

    grid_spec = pltpu.PrefetchScalarGridSpec(
        num_scalar_prefetch=1,          # token ids land in SMEM
        grid=(1,),
        in_specs=[
            full((V, E)),
            full((E, 4 * H)),
            full((H, 4 * H)),
            full((1, 4 * H)),
            full((H, T_pad)),
            full((1, T_pad)),
        ],
        out_specs=full((S, T_pad)),
    )

    out_padded = pl.pallas_call(
        lstm_tagger_kernel,
        out_shape=jax.ShapeDtypeStruct((S, T_pad), jnp.float32),
        grid_spec=grid_spec,
        compiler_params=pltpu.CompilerParams(
            dimension_semantics=("arbitrary",)),
    )(sentence.astype(jnp.int32), emb.astype(jnp.float32),
      w_ih_t, w_hh_t, b, w_out_t, b_o)

    return out_padded[:, :T]


def reference_forward(sentence, emb, w_ih, w_hh, b_ih, b_hh, w_out, b_out):
    """Pure-JAX reference matching torch semantics (gate order i,f,g,o)."""
    H = w_hh.shape[1]
    x = emb[sentence]                                    # (S, E)

    def step(carry, x_t):
        h, c = carry
        gates = x_t @ w_ih.T + h @ w_hh.T + b_ih + b_hh
        i = jax.nn.sigmoid(gates[0 * H:1 * H])
        f = jax.nn.sigmoid(gates[1 * H:2 * H])
        g = jnp.tanh(gates[2 * H:3 * H])
        o = jax.nn.sigmoid(gates[3 * H:4 * H])
        c_new = f * c + i * g
        h_new = o * jnp.tanh(c_new)
        return (h_new, c_new), h_new

    h0 = jnp.zeros((H,), jnp.float32)
    c0 = jnp.zeros((H,), jnp.float32)
    _, h_seq = lax.scan(step, (h0, c0), x)               # (S, H)
    tag_space = h_seq @ w_out.T + b_out                  # (S, T)
    return jax.nn.log_softmax(tag_space, axis=1)


if __name__ == "__main__":
    VOCAB_SIZE = 20
    EMBEDDING_DIM = 16
    HIDDEN_DIM = 32
    TAGSET_SIZE = 8
    SEQ_LEN = 8

    key = jax.random.PRNGKey(0)
    k_ids, k_emb, k_wih, k_whh, k_bih, k_bhh, k_wo, k_bo = jax.random.split(key, 8)

    sentence = jax.random.randint(k_ids, (SEQ_LEN,), 0, VOCAB_SIZE, dtype=jnp.int32)

    # Deterministic parameter init (torch-like: Embedding ~ N(0,1),
    # LSTM/Linear ~ U(-1/sqrt(H), 1/sqrt(H))).
    emb = jax.random.normal(k_emb, (VOCAB_SIZE, EMBEDDING_DIM), jnp.float32)
    s = 1.0 / jnp.sqrt(HIDDEN_DIM)
    w_ih = jax.random.uniform(k_wih, (4 * HIDDEN_DIM, EMBEDDING_DIM), jnp.float32, -s, s)
    w_hh = jax.random.uniform(k_whh, (4 * HIDDEN_DIM, HIDDEN_DIM), jnp.float32, -s, s)
    b_ih = jax.random.uniform(k_bih, (4 * HIDDEN_DIM,), jnp.float32, -s, s)
    b_hh = jax.random.uniform(k_bhh, (4 * HIDDEN_DIM,), jnp.float32, -s, s)
    w_out = jax.random.uniform(k_wo, (TAGSET_SIZE, HIDDEN_DIM), jnp.float32, -s, s)
    b_out = jax.random.uniform(k_bo, (TAGSET_SIZE,), jnp.float32, -s, s)

    out = lstm_tagger_forward(sentence, emb, w_ih, w_hh, b_ih, b_hh, w_out, b_out)
    out = jax.block_until_ready(out)

    ref = reference_forward(sentence, emb, w_ih, w_hh, b_ih, b_hh, w_out, b_out)
    assert out.shape == (SEQ_LEN, TAGSET_SIZE)
    assert jnp.allclose(out, ref, atol=1e-4, rtol=1e-4), "mismatch vs reference"

    print("KERNEL_OK")
</pallas_src>

<mosaic_0001>
module attributes {stable_mosaic.version = 11 : i64} {
  func.func @lstm_tagger_kernel(%arg0: i32, %arg1: memref<8xi32, #tpu.memory_space<smem>>, %arg2: memref<20x16xf32, #tpu.memory_space<vmem>>, %arg3: memref<16x128xf32, #tpu.memory_space<vmem>>, %arg4: memref<32x128xf32, #tpu.memory_space<vmem>>, %arg5: memref<1x128xf32, #tpu.memory_space<vmem>>, %arg6: memref<32x128xf32, #tpu.memory_space<vmem>>, %arg7: memref<1x128xf32, #tpu.memory_space<vmem>>, %arg8: memref<8x128xf32, #tpu.memory_space<vmem>>) attributes {dimension_semantics = [#tpu.dimension_semantics<arbitrary>], iteration_bounds = array<i64: 1>, scalar_prefetch = 1 : i64, scratch_operands = 0 : i64, tpu.core_type = #tpu.core_type<tc>, window_params = [{pipeline_mode = #tpu.pipeline_mode<synchronous>, transform_indices = @transform_0, window_bounds = array<i64: 20, 16>}, {pipeline_mode = #tpu.pipeline_mode<synchronous>, transform_indices = @transform_1, window_bounds = array<i64: 16, 128>}, {pipeline_mode = #tpu.pipeline_mode<synchronous>, transform_indices = @transform_2, window_bounds = array<i64: 32, 128>}, {pipeline_mode = #tpu.pipeline_mode<synchronous>, transform_indices = @transform_3, window_bounds = array<i64: 1, 128>}, {pipeline_mode = #tpu.pipeline_mode<synchronous>, transform_indices = @transform_4, window_bounds = array<i64: 32, 128>}, {pipeline_mode = #tpu.pipeline_mode<synchronous>, transform_indices = @transform_5, window_bounds = array<i64: 1, 128>}, {pipeline_mode = #tpu.pipeline_mode<synchronous>, transform_indices = @transform_6, window_bounds = array<i64: 8, 128>}]} {
    %c0 = arith.constant 0 : index
    %0 = memref.load %arg1[%c0] : memref<8xi32, #tpu.memory_space<smem>>
    %1 = arith.index_cast %0 : i32 to index
    %c0_0 = arith.constant 0 : index
    %2 = vector.load %arg2[%1, %c0_0] : memref<20x16xf32, #tpu.memory_space<vmem>>, vector<1x16xf32>
    %c1 = arith.constant 1 : index
    %3 = memref.load %arg1[%c1] : memref<8xi32, #tpu.memory_space<smem>>
    %4 = arith.index_cast %3 : i32 to index
    %c0_1 = arith.constant 0 : index
    %5 = vector.load %arg2[%4, %c0_1] : memref<20x16xf32, #tpu.memory_space<vmem>>, vector<1x16xf32>
    %c2 = arith.constant 2 : index
    %6 = memref.load %arg1[%c2] : memref<8xi32, #tpu.memory_space<smem>>
    %7 = arith.index_cast %6 : i32 to index
    %c0_2 = arith.constant 0 : index
    %8 = vector.load %arg2[%7, %c0_2] : memref<20x16xf32, #tpu.memory_space<vmem>>, vector<1x16xf32>
    %c3 = arith.constant 3 : index
    %9 = memref.load %arg1[%c3] : memref<8xi32, #tpu.memory_space<smem>>
    %10 = arith.index_cast %9 : i32 to index
    %c0_3 = arith.constant 0 : index
    %11 = vector.load %arg2[%10, %c0_3] : memref<20x16xf32, #tpu.memory_space<vmem>>, vector<1x16xf32>
    %c4 = arith.constant 4 : index
    %12 = memref.load %arg1[%c4] : memref<8xi32, #tpu.memory_space<smem>>
    %13 = arith.index_cast %12 : i32 to index
    %c0_4 = arith.constant 0 : index
    %14 = vector.load %arg2[%13, %c0_4] : memref<20x16xf32, #tpu.memory_space<vmem>>, vector<1x16xf32>
    %c5 = arith.constant 5 : index
    %15 = memref.load %arg1[%c5] : memref<8xi32, #tpu.memory_space<smem>>
    %16 = arith.index_cast %15 : i32 to index
    %c0_5 = arith.constant 0 : index
    %17 = vector.load %arg2[%16, %c0_5] : memref<20x16xf32, #tpu.memory_space<vmem>>, vector<1x16xf32>
    %c6 = arith.constant 6 : index
    %18 = memref.load %arg1[%c6] : memref<8xi32, #tpu.memory_space<smem>>
    %19 = arith.index_cast %18 : i32 to index
    %c0_6 = arith.constant 0 : index
    %20 = vector.load %arg2[%19, %c0_6] : memref<20x16xf32, #tpu.memory_space<vmem>>, vector<1x16xf32>
    %c7 = arith.constant 7 : index
    %21 = memref.load %arg1[%c7] : memref<8xi32, #tpu.memory_space<smem>>
    %22 = arith.index_cast %21 : i32 to index
    %c0_7 = arith.constant 0 : index
    %23 = vector.load %arg2[%22, %c0_7] : memref<20x16xf32, #tpu.memory_space<vmem>>, vector<1x16xf32>
    %24 = tpu.concatenate %2, %5, %8, %11, %14, %17, %20, %23 in 0 : vector<1x16xf32>, vector<1x16xf32>, vector<1x16xf32>, vector<1x16xf32>, vector<1x16xf32>, vector<1x16xf32>, vector<1x16xf32>, vector<1x16xf32> -> vector<8x16xf32>
    %c0_8 = arith.constant 0 : index
    %c0_9 = arith.constant 0 : index
    %25 = vector.load %arg3[%c0_8, %c0_9] : memref<16x128xf32, #tpu.memory_space<vmem>>, vector<16x128xf32>
    %cst = arith.constant dense<0.000000e+00> : vector<8x128xf32>
    %26 = tpu.matmul %24, %25, %cst {dimension_numbers = #tpu.dot_dimension_numbers<[1], [0], [0], [1], [0, 0, 1, 1], [], []>} : vector<8x16xf32>, vector<16x128xf32>, vector<8x128xf32> -> vector<8x128xf32>
    %c0_10 = arith.constant 0 : index
    %c0_11 = arith.constant 0 : index
    %27 = vector.load %arg5[%c0_10, %c0_11] : memref<1x128xf32, #tpu.memory_space<vmem>>, vector<1x128xf32>
    %28 = vector.broadcast %27 : vector<1x128xf32> to vector<8x128xf32>
    %29 = arith.addf %26, %28 : vector<8x128xf32>
    %c0_12 = arith.constant 0 : index
    %c0_13 = arith.constant 0 : index
    %30 = vector.load %arg4[%c0_12, %c0_13] : memref<32x128xf32, #tpu.memory_space<vmem>>, vector<32x128xf32>
    %cst_14 = arith.constant 0.000000e+00 : f32
    %31 = vector.broadcast %cst_14 : f32 to vector<1x32xf32>
    %cst_15 = arith.constant 0.000000e+00 : f32
    %32 = vector.broadcast %cst_15 : f32 to vector<1x32xf32>
    %33 = vector.extract_strided_slice %29 {offsets = [0, 0], sizes = [1, 128], strides = [1, 1]} : vector<8x128xf32> to vector<1x128xf32>
    %cst_16 = arith.constant dense<0.000000e+00> : vector<1x128xf32>
    %34 = tpu.matmul %31, %30, %cst_16 {dimension_numbers = #tpu.dot_dimension_numbers<[1], [0], [0], [1], [0, 0, 1, 1], [], []>} : vector<1x32xf32>, vector<32x128xf32>, vector<1x128xf32> -> vector<1x128xf32>
    %35 = arith.addf %33, %34 : vector<1x128xf32>
    %36 = arith.negf %35 : vector<1x128xf32>
    %37 = math.exp %36 : vector<1x128xf32>
    %cst_17 = arith.constant 1.000000e+00 : f32
    %38 = vector.broadcast %cst_17 : f32 to vector<1x128xf32>
    %39 = arith.addf %38, %37 : vector<1x128xf32>
    %40 = arith.divf %38, %39 : vector<1x128xf32>
    %41 = math.tanh %35 : vector<1x128xf32>
    %42 = vector.extract_strided_slice %40 {offsets = [0, 0], sizes = [1, 32], strides = [1, 1]} : vector<1x128xf32> to vector<1x32xf32>
    %43 = vector.extract_strided_slice %40 {offsets = [0, 32], sizes = [1, 32], strides = [1, 1]} : vector<1x128xf32> to vector<1x32xf32>
    %44 = vector.extract_strided_slice %41 {offsets = [0, 64], sizes = [1, 32], strides = [1, 1]} : vector<1x128xf32> to vector<1x32xf32>
    %45 = vector.extract_strided_slice %40 {offsets = [0, 96], sizes = [1, 32], strides = [1, 1]} : vector<1x128xf32> to vector<1x32xf32>
    %46 = arith.mulf %43, %32 : vector<1x32xf32>
    %47 = arith.mulf %42, %44 : vector<1x32xf32>
    %48 = arith.addf %46, %47 : vector<1x32xf32>
    %49 = math.tanh %48 : vector<1x32xf32>
    %50 = arith.mulf %45, %49 : vector<1x32xf32>
    %51 = vector.extract_strided_slice %29 {offsets = [1, 0], sizes = [1, 128], strides = [1, 1]} : vector<8x128xf32> to vector<1x128xf32>
    %cst_18 = arith.constant dense<0.000000e+00> : vector<1x128xf32>
    %52 = tpu.matmul %50, %30, %cst_18 {dimension_numbers = #tpu.dot_dimension_numbers<[1], [0], [0], [1], [0, 0, 1, 1], [], []>} : vector<1x32xf32>, vector<32x128xf32>, vector<1x128xf32> -> vector<1x128xf32>
    %53 = arith.addf %51, %52 : vector<1x128xf32>
    %54 = arith.negf %53 : vector<1x128xf32>
    %55 = math.exp %54 : vector<1x128xf32>
    %cst_19 = arith.constant 1.000000e+00 : f32
    %56 = vector.broadcast %cst_19 : f32 to vector<1x128xf32>
    %57 = arith.addf %56, %55 : vector<1x128xf32>
    %58 = arith.divf %56, %57 : vector<1x128xf32>
    %59 = math.tanh %53 : vector<1x128xf32>
    %60 = vector.extract_strided_slice %58 {offsets = [0, 0], sizes = [1, 32], strides = [1, 1]} : vector<1x128xf32> to vector<1x32xf32>
    %61 = vector.extract_strided_slice %58 {offsets = [0, 32], sizes = [1, 32], strides = [1, 1]} : vector<1x128xf32> to vector<1x32xf32>
    %62 = vector.extract_strided_slice %59 {offsets = [0, 64], sizes = [1, 32], strides = [1, 1]} : vector<1x128xf32> to vector<1x32xf32>
    %63 = vector.extract_strided_slice %58 {offsets = [0, 96], sizes = [1, 32], strides = [1, 1]} : vector<1x128xf32> to vector<1x32xf32>
    %64 = arith.mulf %61, %48 : vector<1x32xf32>
    %65 = arith.mulf %60, %62 : vector<1x32xf32>
    %66 = arith.addf %64, %65 : vector<1x32xf32>
    %67 = math.tanh %66 : vector<1x32xf32>
    %68 = arith.mulf %63, %67 : vector<1x32xf32>
    %69 = vector.extract_strided_slice %29 {offsets = [2, 0], sizes = [1, 128], strides = [1, 1]} : vector<8x128xf32> to vector<1x128xf32>
    %cst_20 = arith.constant dense<0.000000e+00> : vector<1x128xf32>
    %70 = tpu.matmul %68, %30, %cst_20 {dimension_numbers = #tpu.dot_dimension_numbers<[1], [0], [0], [1], [0, 0, 1, 1], [], []>} : vector<1x32xf32>, vector<32x128xf32>, vector<1x128xf32> -> vector<1x128xf32>
    %71 = arith.addf %69, %70 : vector<1x128xf32>
    %72 = arith.negf %71 : vector<1x128xf32>
    %73 = math.exp %72 : vector<1x128xf32>
    %cst_21 = arith.constant 1.000000e+00 : f32
    %74 = vector.broadcast %cst_21 : f32 to vector<1x128xf32>
    %75 = arith.addf %74, %73 : vector<1x128xf32>
    %76 = arith.divf %74, %75 : vector<1x128xf32>
    %77 = math.tanh %71 : vector<1x128xf32>
    %78 = vector.extract_strided_slice %76 {offsets = [0, 0], sizes = [1, 32], strides = [1, 1]} : vector<1x128xf32> to vector<1x32xf32>
    %79 = vector.extract_strided_slice %76 {offsets = [0, 32], sizes = [1, 32], strides = [1, 1]} : vector<1x128xf32> to vector<1x32xf32>
    %80 = vector.extract_strided_slice %77 {offsets = [0, 64], sizes = [1, 32], strides = [1, 1]} : vector<1x128xf32> to vector<1x32xf32>
    %81 = vector.extract_strided_slice %76 {offsets = [0, 96], sizes = [1, 32], strides = [1, 1]} : vector<1x128xf32> to vector<1x32xf32>
    %82 = arith.mulf %79, %66 : vector<1x32xf32>
    %83 = arith.mulf %78, %80 : vector<1x32xf32>
    %84 = arith.addf %82, %83 : vector<1x32xf32>
    %85 = math.tanh %84 : vector<1x32xf32>
    %86 = arith.mulf %81, %85 : vector<1x32xf32>
    %87 = vector.extract_strided_slice %29 {offsets = [3, 0], sizes = [1, 128], strides = [1, 1]} : vector<8x128xf32> to vector<1x128xf32>
    %cst_22 = arith.constant dense<0.000000e+00> : vector<1x128xf32>
    %88 = tpu.matmul %86, %30, %cst_22 {dimension_numbers = #tpu.dot_dimension_numbers<[1], [0], [0], [1], [0, 0, 1, 1], [], []>} : vector<1x32xf32>, vector<32x128xf32>, vector<1x128xf32> -> vector<1x128xf32>
    %89 = arith.addf %87, %88 : vector<1x128xf32>
    %90 = arith.negf %89 : vector<1x128xf32>
    %91 = math.exp %90 : vector<1x128xf32>
    %cst_23 = arith.constant 1.000000e+00 : f32
    %92 = vector.broadcast %cst_23 : f32 to vector<1x128xf32>
    %93 = arith.addf %92, %91 : vector<1x128xf32>
    %94 = arith.divf %92, %93 : vector<1x128xf32>
    %95 = math.tanh %89 : vector<1x128xf32>
    %96 = vector.extract_strided_slice %94 {offsets = [0, 0], sizes = [1, 32], strides = [1, 1]} : vector<1x128xf32> to vector<1x32xf32>
    %97 = vector.extract_strided_slice %94 {offsets = [0, 32], sizes = [1, 32], strides = [1, 1]} : vector<1x128xf32> to vector<1x32xf32>
    %98 = vector.extract_strided_slice %95 {offsets = [0, 64], sizes = [1, 32], strides = [1, 1]} : vector<1x128xf32> to vector<1x32xf32>
    %99 = vector.extract_strided_slice %94 {offsets = [0, 96], sizes = [1, 32], strides = [1, 1]} : vector<1x128xf32> to vector<1x32xf32>
    %100 = arith.mulf %97, %84 : vector<1x32xf32>
    %101 = arith.mulf %96, %98 : vector<1x32xf32>
    %102 = arith.addf %100, %101 : vector<1x32xf32>
    %103 = math.tanh %102 : vector<1x32xf32>
    %104 = arith.mulf %99, %103 : vector<1x32xf32>
    %105 = vector.extract_strided_slice %29 {offsets = [4, 0], sizes = [1, 128], strides = [1, 1]} : vector<8x128xf32> to vector<1x128xf32>
    %cst_24 = arith.constant dense<0.000000e+00> : vector<1x128xf32>
    %106 = tpu.matmul %104, %30, %cst_24 {dimension_numbers = #tpu.dot_dimension_numbers<[1], [0], [0], [1], [0, 0, 1, 1], [], []>} : vector<1x32xf32>, vector<32x128xf32>, vector<1x128xf32> -> vector<1x128xf32>
    %107 = arith.addf %105, %106 : vector<1x128xf32>
    %108 = arith.negf %107 : vector<1x128xf32>
    %109 = math.exp %108 : vector<1x128xf32>
    %cst_25 = arith.constant 1.000000e+00 : f32
    %110 = vector.broadcast %cst_25 : f32 to vector<1x128xf32>
    %111 = arith.addf %110, %109 : vector<1x128xf32>
    %112 = arith.divf %110, %111 : vector<1x128xf32>
    %113 = math.tanh %107 : vector<1x128xf32>
    %114 = vector.extract_strided_slice %112 {offsets = [0, 0], sizes = [1, 32], strides = [1, 1]} : vector<1x128xf32> to vector<1x32xf32>
    %115 = vector.extract_strided_slice %112 {offsets = [0, 32], sizes = [1, 32], strides = [1, 1]} : vector<1x128xf32> to vector<1x32xf32>
    %116 = vector.extract_strided_slice %113 {offsets = [0, 64], sizes = [1, 32], strides = [1, 1]} : vector<1x128xf32> to vector<1x32xf32>
    %117 = vector.extract_strided_slice %112 {offsets = [0, 96], sizes = [1, 32], strides = [1, 1]} : vector<1x128xf32> to vector<1x32xf32>
    %118 = arith.mulf %115, %102 : vector<1x32xf32>
    %119 = arith.mulf %114, %116 : vector<1x32xf32>
    %120 = arith.addf %118, %119 : vector<1x32xf32>
    %121 = math.tanh %120 : vector<1x32xf32>
    %122 = arith.mulf %117, %121 : vector<1x32xf32>
    %123 = vector.extract_strided_slice %29 {offsets = [5, 0], sizes = [1, 128], strides = [1, 1]} : vector<8x128xf32> to vector<1x128xf32>
    %cst_26 = arith.constant dense<0.000000e+00> : vector<1x128xf32>
    %124 = tpu.matmul %122, %30, %cst_26 {dimension_numbers = #tpu.dot_dimension_numbers<[1], [0], [0], [1], [0, 0, 1, 1], [], []>} : vector<1x32xf32>, vector<32x128xf32>, vector<1x128xf32> -> vector<1x128xf32>
    %125 = arith.addf %123, %124 : vector<1x128xf32>
    %126 = arith.negf %125 : vector<1x128xf32>
    %127 = math.exp %126 : vector<1x128xf32>
    %cst_27 = arith.constant 1.000000e+00 : f32
    %128 = vector.broadcast %cst_27 : f32 to vector<1x128xf32>
    %129 = arith.addf %128, %127 : vector<1x128xf32>
    %130 = arith.divf %128, %129 : vector<1x128xf32>
    %131 = math.tanh %125 : vector<1x128xf32>
    %132 = vector.extract_strided_slice %130 {offsets = [0, 0], sizes = [1, 32], strides = [1, 1]} : vector<1x128xf32> to vector<1x32xf32>
    %133 = vector.extract_strided_slice %130 {offsets = [0, 32], sizes = [1, 32], strides = [1, 1]} : vector<1x128xf32> to vector<1x32xf32>
    %134 = vector.extract_strided_slice %131 {offsets = [0, 64], sizes = [1, 32], strides = [1, 1]} : vector<1x128xf32> to vector<1x32xf32>
    %135 = vector.extract_strided_slice %130 {offsets = [0, 96], sizes = [1, 32], strides = [1, 1]} : vector<1x128xf32> to vector<1x32xf32>
    %136 = arith.mulf %133, %120 : vector<1x32xf32>
    %137 = arith.mulf %132, %134 : vector<1x32xf32>
    %138 = arith.addf %136, %137 : vector<1x32xf32>
    %139 = math.tanh %138 : vector<1x32xf32>
    %140 = arith.mulf %135, %139 : vector<1x32xf32>
    %141 = vector.extract_strided_slice %29 {offsets = [6, 0], sizes = [1, 128], strides = [1, 1]} : vector<8x128xf32> to vector<1x128xf32>
    %cst_28 = arith.constant dense<0.000000e+00> : vector<1x128xf32>
    %142 = tpu.matmul %140, %30, %cst_28 {dimension_numbers = #tpu.dot_dimension_numbers<[1], [0], [0], [1], [0, 0, 1, 1], [], []>} : vector<1x32xf32>, vector<32x128xf32>, vector<1x128xf32> -> vector<1x128xf32>
    %143 = arith.addf %141, %142 : vector<1x128xf32>
    %144 = arith.negf %143 : vector<1x128xf32>
    %145 = math.exp %144 : vector<1x128xf32>
    %cst_29 = arith.constant 1.000000e+00 : f32
    %146 = vector.broadcast %cst_29 : f32 to vector<1x128xf32>
    %147 = arith.addf %146, %145 : vector<1x128xf32>
    %148 = arith.divf %146, %147 : vector<1x128xf32>
    %149 = math.tanh %143 : vector<1x128xf32>
    %150 = vector.extract_strided_slice %148 {offsets = [0, 0], sizes = [1, 32], strides = [1, 1]} : vector<1x128xf32> to vector<1x32xf32>
    %151 = vector.extract_strided_slice %148 {offsets = [0, 32], sizes = [1, 32], strides = [1, 1]} : vector<1x128xf32> to vector<1x32xf32>
    %152 = vector.extract_strided_slice %149 {offsets = [0, 64], sizes = [1, 32], strides = [1, 1]} : vector<1x128xf32> to vector<1x32xf32>
    %153 = vector.extract_strided_slice %148 {offsets = [0, 96], sizes = [1, 32], strides = [1, 1]} : vector<1x128xf32> to vector<1x32xf32>
    %154 = arith.mulf %151, %138 : vector<1x32xf32>
    %155 = arith.mulf %150, %152 : vector<1x32xf32>
    %156 = arith.addf %154, %155 : vector<1x32xf32>
    %157 = math.tanh %156 : vector<1x32xf32>
    %158 = arith.mulf %153, %157 : vector<1x32xf32>
    %159 = vector.extract_strided_slice %29 {offsets = [7, 0], sizes = [1, 128], strides = [1, 1]} : vector<8x128xf32> to vector<1x128xf32>
    %cst_30 = arith.constant dense<0.000000e+00> : vector<1x128xf32>
    %160 = tpu.matmul %158, %30, %cst_30 {dimension_numbers = #tpu.dot_dimension_numbers<[1], [0], [0], [1], [0, 0, 1, 1], [], []>} : vector<1x32xf32>, vector<32x128xf32>, vector<1x128xf32> -> vector<1x128xf32>
    %161 = arith.addf %159, %160 : vector<1x128xf32>
    %162 = arith.negf %161 : vector<1x128xf32>
    %163 = math.exp %162 : vector<1x128xf32>
    %cst_31 = arith.constant 1.000000e+00 : f32
    %164 = vector.broadcast %cst_31 : f32 to vector<1x128xf32>
    %165 = arith.addf %164, %163 : vector<1x128xf32>
    %166 = arith.divf %164, %165 : vector<1x128xf32>
    %167 = math.tanh %161 : vector<1x128xf32>
    %168 = vector.extract_strided_slice %166 {offsets = [0, 0], sizes = [1, 32], strides = [1, 1]} : vector<1x128xf32> to vector<1x32xf32>
    %169 = vector.extract_strided_slice %166 {offsets = [0, 32], sizes = [1, 32], strides = [1, 1]} : vector<1x128xf32> to vector<1x32xf32>
    %170 = vector.extract_strided_slice %167 {offsets = [0, 64], sizes = [1, 32], strides = [1, 1]} : vector<1x128xf32> to vector<1x32xf32>
    %171 = vector.extract_strided_slice %166 {offsets = [0, 96], sizes = [1, 32], strides = [1, 1]} : vector<1x128xf32> to vector<1x32xf32>
    %172 = arith.mulf %169, %156 : vector<1x32xf32>
    %173 = arith.mulf %168, %170 : vector<1x32xf32>
    %174 = arith.addf %172, %173 : vector<1x32xf32>
    %175 = math.tanh %174 : vector<1x32xf32>
    %176 = arith.mulf %171, %175 : vector<1x32xf32>
    %177 = tpu.concatenate %50, %68, %86, %104, %122, %140, %158, %176 in 0 : vector<1x32xf32>, vector<1x32xf32>, vector<1x32xf32>, vector<1x32xf32>, vector<1x32xf32>, vector<1x32xf32>, vector<1x32xf32>, vector<1x32xf32> -> vector<8x32xf32>
    %c0_32 = arith.constant 0 : index
    %c0_33 = arith.constant 0 : index
    %178 = vector.load %arg6[%c0_32, %c0_33] : memref<32x128xf32, #tpu.memory_space<vmem>>, vector<32x128xf32>
    %cst_34 = arith.constant dense<0.000000e+00> : vector<8x128xf32>
    %179 = tpu.matmul %177, %178, %cst_34 {dimension_numbers = #tpu.dot_dimension_numbers<[1], [0], [0], [1], [0, 0, 1, 1], [], []>} : vector<8x32xf32>, vector<32x128xf32>, vector<8x128xf32> -> vector<8x128xf32>
    %c0_35 = arith.constant 0 : index
    %c0_36 = arith.constant 0 : index
    %180 = vector.load %arg7[%c0_35, %c0_36] : memref<1x128xf32, #tpu.memory_space<vmem>>, vector<1x128xf32>
    %181 = vector.broadcast %180 : vector<1x128xf32> to vector<8x128xf32>
    %182 = arith.addf %179, %181 : vector<8x128xf32>
    %cst_37 = arith.constant dense<0xFF800000> : vector<8xf32>
    %183 = vector.multi_reduction <maximumf>, %182, %cst_37 [1] : vector<8x128xf32> to vector<8xf32>
    %184 = vector.shape_cast %183 : vector<8xf32> to vector<8x1xf32>
    %185 = vector.broadcast %184 : vector<8x1xf32> to vector<8x128xf32>
    %186 = arith.subf %182, %185 : vector<8x128xf32>
    %187 = math.exp %186 : vector<8x128xf32>
    %cst_38 = arith.constant dense<0.000000e+00> : vector<8xf32>
    %188 = vector.multi_reduction <add>, %187, %cst_38 [1] : vector<8x128xf32> to vector<8xf32>
    %189 = vector.shape_cast %188 : vector<8xf32> to vector<8x1xf32>
    %190 = math.log %189 : vector<8x1xf32>
    %191 = arith.addf %190, %184 : vector<8x1xf32>
    %192 = vector.broadcast %191 : vector<8x1xf32> to vector<8x128xf32>
    %193 = arith.subf %182, %192 : vector<8x128xf32>
    %c0_39 = arith.constant 0 : index
    %c0_40 = arith.constant 0 : index
    %194 = vector.load %arg8[%c0_39, %c0_40] : memref<8x128xf32, #tpu.memory_space<vmem>>, vector<8x128xf32>
    tpu.vector_store %arg8[%c0_39, %c0_40], %193 {strides = array<i32>} : memref<8x128xf32, #tpu.memory_space<vmem>>, vector<8x128xf32>,
    return
  }
  func.func @transform_0(%arg0: i32, %arg1: memref<8xi32, #tpu.memory_space<smem>>) -> (i32, i32) {
    %c0_i32 = arith.constant 0 : i32
    %c0_i32_0 = arith.constant 0 : i32
    %c0_i32_1 = arith.constant 0 : i32
    return %c0_i32, %c0_i32_0 : i32, i32
  }
  func.func @transform_1(%arg0: i32, %arg1: memref<8xi32, #tpu.memory_space<smem>>) -> (i32, i32) {
    %c0_i32 = arith.constant 0 : i32
    %c0_i32_0 = arith.constant 0 : i32
    %c0_i32_1 = arith.constant 0 : i32
    return %c0_i32, %c0_i32_0 : i32, i32
  }
  func.func @transform_2(%arg0: i32, %arg1: memref<8xi32, #tpu.memory_space<smem>>) -> (i32, i32) {
    %c0_i32 = arith.constant 0 : i32
    %c0_i32_0 = arith.constant 0 : i32
    %c0_i32_1 = arith.constant 0 : i32
    return %c0_i32, %c0_i32_0 : i32, i32
  }
  func.func @transform_3(%arg0: i32, %arg1: memref<8xi32, #tpu.memory_space<smem>>) -> (i32, i32) {
    %c0_i32 = arith.constant 0 : i32
    %c0_i32_0 = arith.constant 0 : i32
    %c0_i32_1 = arith.constant 0 : i32
    return %c0_i32, %c0_i32_0 : i32, i32
  }
  func.func @transform_4(%arg0: i32, %arg1: memref<8xi32, #tpu.memory_space<smem>>) -> (i32, i32) {
    %c0_i32 = arith.constant 0 : i32
    %c0_i32_0 = arith.constant 0 : i32
    %c0_i32_1 = arith.constant 0 : i32
    return %c0_i32, %c0_i32_0 : i32, i32
  }
  func.func @transform_5(%arg0: i32, %arg1: memref<8xi32, #tpu.memory_space<smem>>) -> (i32, i32) {
    %c0_i32 = arith.constant 0 : i32
    %c0_i32_0 = arith.constant 0 : i32
    %c0_i32_1 = arith.constant 0 : i32
    return %c0_i32, %c0_i32_0 : i32, i32
  }
  func.func @transform_6(%arg0: i32, %arg1: memref<8xi32, #tpu.memory_space<smem>>) -> (i32, i32) {
    %c0_i32 = arith.constant 0 : i32
    %c0_i32_0 = arith.constant 0 : i32
    %c0_i32_1 = arith.constant 0 : i32
    return %c0_i32, %c0_i32_0 : i32, i32
  }
}

</mosaic_0001>

<llo_original>
// kernel: lstm_tagger_forward.1
$region0: #{lstm_tagger_forward.1}
  #allocation0 [shape = 'u32[]', space=smem, size = 0x4, offset = 0x4, fixed_abs, tag = 'smem constant byte address 0x4 - core index']
  #allocation1 [shape = 'u32[144,128]{1,0:T(1,128)}', space=vmem, size = 0x12000, scoped, tag = 'internal scratch']
  #allocation2 [shape = 's32[1]{0}', space=sflag, size = 0x4, scoped, tag = 'scoped memory for lstm_tagger_forward.1']
  #allocation3 [shape = 'u8[512]{0}', space=smem, size = 0x200, scoped, tag = 'prefetched SMEM operand 0']
  %s0 = inlined_call_operand.vmem [shape: s32[8], index: 0, kind: input, shape index: {}]
  %s1 = inlined_call_operand.vmem [shape: f32[20,16], index: 1, kind: input, shape index: {}]
  %s2 = inlined_call_operand.vmem [shape: f32[16,128], index: 2, kind: input, shape index: {}]
  %s3 = inlined_call_operand.vmem [shape: f32[32,128], index: 3, kind: input, shape index: {}]
  %s4 = inlined_call_operand.vmem [shape: f32[1,128], index: 4, kind: input, shape index: {}]
  %s5 = inlined_call_operand.vmem [shape: f32[32,128], index: 5, kind: input, shape index: {}]
  %s6 = inlined_call_operand.vmem [shape: f32[1,128], index: 6, kind: input, shape index: {}]
  %s7 = inlined_call_operand.hbm [shape: f32[8,128], index: 7, kind: output, shape index: {}]
  %s8 = sld [smem:[#allocation0]]
  $region34: #{lstm_tagger_forward.1} parent=0
    _
  %s10 = ssub.s32 1, %s8
  %s11 = scalar_select 0, %s10, %s8
  %s12 = sshll.u32 %s0, 4
  %s13 = int_to_ptr.vmem [resolvable:$true] %s12
  %15 = dma.vmem_to_smem %s13, 16, [#allocation3], [#allocation2]
  %16 = dma.done [#allocation2], 16
  %17 = sfence
  $region1: #{lstm_tagger_forward.1} parent=0
    #allocation4 [shape = 'u8[4096]{0}', space=vmem, size = 0x1000, scoped, tag = 'output window, operand 0, single buffered']
    #allocation5 [shape = 's32[1]{0}', space=sflag, size = 0x4, scoped, tag = 'scoped memory for lstm_tagger_forward.1']
    %18 = vsyncpa [#allocation5], 0
    // Predicated region
    $region2: #{lstm_tagger_forward.1} parent=1 // pred_check
      _
    $region3: #{lstm_tagger_forward.1} parent=1 // pred_check_branch
      %20 = sbr.rel (0) target = $region5
    $region4: #{lstm_tagger_forward.1} parent=1 // pred_region
      _
    $region5: #{lstm_tagger_forward.1} parent=1 // pred_fallthru
      _
    // Predicated region
    $region6: #{lstm_tagger_forward.1} parent=1 // pred_check
      _
    $region7: #{lstm_tagger_forward.1} parent=1 // pred_check_branch
      %22 = sbr.rel (0) target = $region9
    $region8: #{lstm_tagger_forward.1} parent=1 // pred_region
      _
    $region9: #{lstm_tagger_forward.1} parent=1 // pred_fallthru
      _
    // Predicated region
    $region10: #{lstm_tagger_forward.1} parent=1 // pred_check
      _
    $region11: #{lstm_tagger_forward.1} parent=1 // pred_check_branch
      %24 = sbr.rel (0) target = $region13
    $region12: #{lstm_tagger_forward.1} parent=1 // pred_region
      _
    $region13: #{lstm_tagger_forward.1} parent=1 // pred_fallthru
      _
    // Predicated region
    $region14: #{lstm_tagger_forward.1} parent=1 // pred_check
      _
    $region15: #{lstm_tagger_forward.1} parent=1 // pred_check_branch
      %26 = sbr.rel (0) target = $region17
    $region16: #{lstm_tagger_forward.1} parent=1 // pred_region
      _
    $region17: #{lstm_tagger_forward.1} parent=1 // pred_fallthru
      _
    // Predicated region
    $region18: #{lstm_tagger_forward.1} parent=1 // pred_check
      _
    $region19: #{lstm_tagger_forward.1} parent=1 // pred_check_branch
      %28 = sbr.rel (0) target = $region21
    $region20: #{lstm_tagger_forward.1} parent=1 // pred_region
      _
    $region21: #{lstm_tagger_forward.1} parent=1 // pred_fallthru
      _
    // Predicated region
    $region22: #{lstm_tagger_forward.1} parent=1 // pred_check
      _
    $region23: #{lstm_tagger_forward.1} parent=1 // pred_check_branch
      %30 = sbr.rel (0) target = $region25
    $region24: #{lstm_tagger_forward.1} parent=1 // pred_region
      _
    $region25: #{lstm_tagger_forward.1} parent=1 // pred_fallthru
      _
    %s31 = sld [smem:[#allocation3]]
    %s32 = scalar_lea.vmem %s1, %s31
    %v33 = vld [vmem:[%s32] sm:$0x1]
    %s34 = sld [smem:[#allocation3 + $0x1]]
    %s35 = scalar_lea.vmem %s1, %s34
    %v36 = vld [vmem:[%s35] sm:$0x1]
    %s37 = sld [smem:[#allocation3 + $0x2]]
    %s38 = scalar_lea.vmem %s1, %s37
    %v39 = vld [vmem:[%s38] sm:$0x1]
    %s40 = sld [smem:[#allocation3 + $0x3]]
    %s41 = scalar_lea.vmem %s1, %s40
    %v42 = vld [vmem:[%s41] sm:$0x1]
    %s43 = sld [smem:[#allocation3 + $0x4]]
    %s44 = scalar_lea.vmem %s1, %s43
    %v45 = vld [vmem:[%s44] sm:$0x1]
    %s46 = sld [smem:[#allocation3 + $0x5]]
    %s47 = scalar_lea.vmem %s1, %s46
    %v48 = vld [vmem:[%s47] sm:$0x1]
    %s49 = sld [smem:[#allocation3 + $0x6]]
    %s50 = scalar_lea.vmem %s1, %s49
    %v51 = vld [vmem:[%s50] sm:$0x1]
    %s52 = sld [smem:[#allocation3 + $0x7]]
    %s53 = scalar_lea.vmem %s1, %s52
    %v54 = vld [vmem:[%s53] sm:$0x1]
    %v56 = vrot.slane %v36, 7
    %v59 = vrot.slane %v39, 6
    %v62 = vrot.slane %v42, 5
    %v65 = vrot.slane %v45, 4
    %v68 = vrot.slane %v48, 3
    %v71 = vrot.slane %v51, 2
    %v74 = vrot.slane %v54, 1
    %vm76 = vcmask 1040384
    %v77 = vsel %vm76, %v33, %v56
    %vm78 = vcmask 1041408
    %v79 = vsel %vm78, %v77, %v59
    %vm80 = vcmask 1042432
    %v81 = vsel %vm80, %v79, %v62
    %vm82 = vcmask 1043456
    %v83 = vsel %vm82, %v81, %v65
    %vm84 = vcmask 1044480
    %v85 = vsel %vm84, %v83, %v68
    %vm86 = vcmask 1045504
    %v87 = vsel %vm86, %v85, %v71
    %vm88 = vcmask 1046528
    %v89 = vsel %vm88, %v87, %v74
    %v90 = vld [vmem:[%s2] sm:$0xff]
    %v91 = vld [vmem:[%s2 + $0x8] sm:$0xff]
    %v92 = vld [vmem:[%s4] sm:$0x1]
    %v94 = vlaneseq
    %v95 = vshrl.u32 %v94, 7
    %v96 = vsub.s32 0, %v95
    %v97 = vrot.slane %v92, %v96
    %vm99 = vcmask 130048
    %v101 = vsel %vm99, %v89, 0
    %103 = vmatprep.subr.mxu0 0.0
    %104 = vmatpush1.msra.mxu0 %v90
    %105 = vmatprep.subr.mxu0 0.0
    %106 = vmatpush1.msra.mxu0 %v91
    %107 = vmatprep.subr.mxu0 0.0
    %108 = vmatpush1.msra.mxu0 0.0
    %109 = vmatprep.subr.mxu0 0.0
    %110 = vmatpush1.msra.mxu0 0.0
    %111 = vmatprep.subr.mxu0 0.0
    %112 = vmatpush1.msra.mxu0 0.0
    %113 = vmatprep.subr.mxu0 0.0
    %114 = vmatpush1.msra.mxu0 0.0
    %115 = vmatprep.subr.mxu0 0.0
    %116 = vmatpush1.msra.mxu0 0.0
    %117 = vmatprep.subr.mxu0 0.0
    %118 = vmatpush1.msra.mxu0 0.0
    %119 = vmatprep.subr.mxu0 0.0
    %120 = vmatpush1.msra.mxu0 0.0
    %121 = vmatprep.subr.mxu0 0.0
    %122 = vmatpush1.msra.mxu0 0.0
    %123 = vmatprep.subr.mxu0 0.0
    %124 = vmatpush1.msra.mxu0 0.0
    %125 = vmatprep.subr.mxu0 0.0
    %126 = vmatpush1.msra.mxu0 0.0
    %127 = vmatprep.subr.mxu0 0.0
    %128 = vmatpush1.msra.mxu0 0.0
    %129 = vmatprep.subr.mxu0 0.0
    %130 = vmatpush1.msra.mxu0 0.0
    %131 = vmatprep.subr.mxu0 0.0
    %132 = vmatpush1.msra.mxu0 0.0
    %133 = vmatprep.subr.mxu0 0.0
    %134 = vmatpush1.msra.mxu0 0.0
    %135 = vmatprep.subr.mxu0 0.0
    %136 = vmatpush1.msra.mxu0 0.0
    %137 = vmatprep.subr.mxu0 0.0
    %138 = vmatpush1.msra.mxu0 0.0
    %139 = vmatprep.subr.mxu0 0.0
    %140 = vmatpush1.msra.mxu0 0.0
    %141 = vmatprep.subr.mxu0 0.0
    %142 = vmatpush1.msra.mxu0 0.0
    %143 = vmatprep.subr.mxu0 0.0
    %144 = vmatpush1.msra.mxu0 0.0
    %145 = vmatprep.subr.mxu0 0.0
    %146 = vmatpush1.msra.mxu0 0.0
    %147 = vmatprep.subr.mxu0 0.0
    %148 = vmatpush1.msra.mxu0 0.0
    %149 = vmatprep.subr.mxu0 0.0
    %150 = vmatpush1.msra.mxu0 0.0
    %151 = vmatprep.subr.mxu0 0.0
    %152 = vmatpush1.msra.mxu0 0.0
    %153 = vmatprep.subr.mxu0 0.0
    %154 = vmatpush1.msra.mxu0 0.0
    %155 = vmatprep.subr.mxu0 0.0
    %156 = vmatpush1.msra.mxu0 0.0
    %157 = vmatprep.subr.mxu0 0.0
    %158 = vmatpush1.msra.mxu0 0.0
    %159 = vmatprep.subr.mxu0 0.0
    %160 = vmatpush1.msra.mxu0 0.0
    %161 = vmatprep.subr.mxu0 0.0
    %162 = vmatpush1.msra.mxu0 0.0
    %163 = vmatprep.subr.mxu0 0.0
    %164 = vmatpush1.msra.mxu0 0.0
    %165 = vmatprep.subr.mxu0 0.0
    %166 = vmatpush1.msra.mxu0 0.0
    %167 = vmatprep.mubr.f32.mxu0 0.0
    %168 = vmatmul.mubr.f32.gmra.mrb[0].mxu0 %v101
    %v169 = vpop.f32.mrb[0].mxu0
    %v170 = vadd.f32 %v97, %v169
    %v171 = vpop.f32.mrb[0].mxu0
    %172 = vdwg.mxu0
    %v173 = vld [vmem:[%s3] sm:$0xff]
    %v174 = vld [vmem:[%s3 + $0x8] sm:$0xff]
    %v175 = vld [vmem:[%s3 + $0x10] sm:$0xff]
    %v176 = vld [vmem:[%s3 + $0x18] sm:$0xff]
    %vm177 = vcmask 261120
    %v179 = vsel %vm177, 0.0, 0
    %181 = vmatprep.subr.mxu0 0.0
    %182 = vmatpush1.msra.mxu0 %v173
    %183 = vmatprep.subr.mxu0 0.0
    %184 = vmatpush1.msra.mxu0 %v174
    %185 = vmatprep.subr.mxu0 0.0
    %186 = vmatpush1.msra.mxu0 %v175
    %187 = vmatprep.subr.mxu0 0.0
    %188 = vmatpush1.msra.mxu0 %v176
    %189 = vmatprep.subr.mxu0 0.0
    %190 = vmatpush1.msra.mxu0 0.0
    %191 = vmatprep.subr.mxu0 0.0
    %192 = vmatpush1.msra.mxu0 0.0
    %193 = vmatprep.subr.mxu0 0.0
    %194 = vmatpush1.msra.mxu0 0.0
    %195 = vmatprep.subr.mxu0 0.0
    %196 = vmatpush1.msra.mxu0 0.0
    %197 = vmatprep.subr.mxu0 0.0
    %198 = vmatpush1.msra.mxu0 0.0
    %199 = vmatprep.subr.mxu0 0.0
    %200 = vmatpush1.msra.mxu0 0.0
    %201 = vmatprep.subr.mxu0 0.0
    %202 = vmatpush1.msra.mxu0 0.0
    %203 = vmatprep.subr.mxu0 0.0
    %204 = vmatpush1.msra.mxu0 0.0
    %205 = vmatprep.subr.mxu0 0.0
    %206 = vmatpush1.msra.mxu0 0.0
    %207 = vmatprep.subr.mxu0 0.0
    %208 = vmatpush1.msra.mxu0 0.0
    %209 = vmatprep.subr.mxu0 0.0
    %210 = vmatpush1.msra.mxu0 0.0
    %211 = vmatprep.subr.mxu0 0.0
    %212 = vmatpush1.msra.mxu0 0.0
    %213 = vmatprep.subr.mxu0 0.0
    %214 = vmatpush1.msra.mxu0 0.0
    %215 = vmatprep.subr.mxu0 0.0
    %216 = vmatpush1.msra.mxu0 0.0
    %217 = vmatprep.subr.mxu0 0.0
    %218 = vmatpush1.msra.mxu0 0.0
    %219 = vmatprep.subr.mxu0 0.0
    %220 = vmatpush1.msra.mxu0 0.0
    %221 = vmatprep.subr.mxu0 0.0
    %222 = vmatpush1.msra.mxu0 0.0
    %223 = vmatprep.subr.mxu0 0.0
    %224 = vmatpush1.msra.mxu0 0.0
    %225 = vmatprep.subr.mxu0 0.0
    %226 = vmatpush1.msra.mxu0 0.0
    %227 = vmatprep.subr.mxu0 0.0
    %228 = vmatpush1.msra.mxu0 0.0
    %229 = vmatprep.subr.mxu0 0.0
    %230 = vmatpush1.msra.mxu0 0.0
    %231 = vmatprep.subr.mxu0 0.0
    %232 = vmatpush1.msra.mxu0 0.0
    %233 = vmatprep.subr.mxu0 0.0
    %234 = vmatpush1.msra.mxu0 0.0
    %235 = vmatprep.subr.mxu0 0.0
    %236 = vmatpush1.msra.mxu0 0.0
    %237 = vmatprep.subr.mxu0 0.0
    %238 = vmatpush1.msra.mxu0 0.0
    %239 = vmatprep.subr.mxu0 0.0
    %240 = vmatpush1.msra.mxu0 0.0
    %241 = vmatprep.subr.mxu0 0.0
    %242 = vmatpush1.msra.mxu0 0.0
    %243 = vmatprep.subr.mxu0 0.0
    %244 = vmatpush1.msra.mxu0 0.0
    %245 = vmatprep.mubr.f32.mxu0 0.0
    %246 = vmatmul.mubr.f32.gmra.mrb[0].mxu0 %v179
    %v247 = vpop.f32.mrb[0].mxu0
    %v248 = vadd.f32 0.0, %v247
    %v249 = vpop.f32.mrb[0].mxu0
    %250 = vdwg.mxu0
    %v251 = vadd.f32 %v170, %v248
    %v252 = vxor.u32 %v251, 2147483648
    %v253 = vmul.f32 %v252, 1.442695
    %v254 = vpow.pop %v253
    %v255 = vadd.f32 %v254, 1.0
    %v256 = vrcp.pop %v255
    %v257 = vmul.f32 1.0, %v256
    %v258 = vtanh.pop %v251
    %v259 = vmul.f32 %v257, 0.0
    %261 = vrot.lane.b32.xlu0 %v258, 64
    %v262 = vpop.permute.xlu0 %261
    %v264 = vmul.f32 %v257, %v262
    %266 = vrot.lane.b32.xlu0 %v264, 32
    %v267 = vpop.permute.xlu0 %266
    %v269 = vadd.f32 %v259, %v267
    %v270 = vtanh.pop %v269
    %272 = vrot.lane.b32.xlu0 %v270, 64
    %v273 = vpop.permute.xlu0 %272
    %v275 = vmul.f32 %v257, %v273
    %277 = vrot.lane.b32.xlu0 %v275, 32
    %v278 = vpop.permute.xlu0 %277
    %v279 = vsel %vm177, %v278, 0
    %281 = vmatprep.subr.mxu0 0.0
    %282 = vmatpush1.msra.mxu0 %v173
    %283 = vmatprep.subr.mxu0 0.0
    %284 = vmatpush1.msra.mxu0 %v174
    %285 = vmatprep.subr.mxu0 0.0
    %286 = vmatpush1.msra.mxu0 %v175
    %287 = vmatprep.subr.mxu0 0.0
    %288 = vmatpush1.msra.mxu0 %v176
    %289 = vmatprep.subr.mxu0 0.0
    %290 = vmatpush1.msra.mxu0 0.0
    %291 = vmatprep.subr.mxu0 0.0
    %292 = vmatpush1.msra.mxu0 0.0
    %293 = vmatprep.subr.mxu0 0.0
    %294 = vmatpush1.msra.mxu0 0.0
    %295 = vmatprep.subr.mxu0 0.0
    %296 = vmatpush1.msra.mxu0 0.0
    %297 = vmatprep.subr.mxu0 0.0
    %298 = vmatpush1.msra.mxu0 0.0
    %299 = vmatprep.subr.mxu0 0.0
    %300 = vmatpush1.msra.mxu0 0.0
    %301 = vmatprep.subr.mxu0 0.0
    %302 = vmatpush1.msra.mxu0 0.0
    %303 = vmatprep.subr.mxu0 0.0
    %304 = vmatpush1.msra.mxu0 0.0
    %305 = vmatprep.subr.mxu0 0.0
    %306 = vmatpush1.msra.mxu0 0.0
    %307 = vmatprep.subr.mxu0 0.0
    %308 = vmatpush1.msra.mxu0 0.0
    %309 = vmatprep.subr.mxu0 0.0
    %310 = vmatpush1.msra.mxu0 0.0
    %311 = vmatprep.subr.mxu0 0.0
    %312 = vmatpush1.msra.mxu0 0.0
    %313 = vmatprep.subr.mxu0 0.0
    %314 = vmatpush1.msra.mxu0 0.0
    %315 = vmatprep.subr.mxu0 0.0
    %316 = vmatpush1.msra.mxu0 0.0
    %317 = vmatprep.subr.mxu0 0.0
    %318 = vmatpush1.msra.mxu0 0.0
    %319 = vmatprep.subr.mxu0 0.0
    %320 = vmatpush1.msra.mxu0 0.0
    %321 = vmatprep.subr.mxu0 0.0
    %322 = vmatpush1.msra.mxu0 0.0
    %323 = vmatprep.subr.mxu0 0.0
    %324 = vmatpush1.msra.mxu0 0.0
    %325 = vmatprep.subr.mxu0 0.0
    %326 = vmatpush1.msra.mxu0 0.0
    %327 = vmatprep.subr.mxu0 0.0
    %328 = vmatpush1.msra.mxu0 0.0
    %329 = vmatprep.subr.mxu0 0.0
    %330 = vmatpush1.msra.mxu0 0.0
    %331 = vmatprep.subr.mxu0 0.0
    %332 = vmatpush1.msra.mxu0 0.0
    %333 = vmatprep.subr.mxu0 0.0
    %334 = vmatpush1.msra.mxu0 0.0
    %335 = vmatprep.subr.mxu0 0.0
    %336 = vmatpush1.msra.mxu0 0.0
    %337 = vmatprep.subr.mxu0 0.0
    %338 = vmatpush1.msra.mxu0 0.0
    %339 = vmatprep.subr.mxu0 0.0
    %340 = vmatpush1.msra.mxu0 0.0
    %341 = vmatprep.subr.mxu0 0.0
    %342 = vmatpush1.msra.mxu0 0.0
    %343 = vmatprep.subr.mxu0 0.0
    %344 = vmatpush1.msra.mxu0 0.0
    %345 = vmatprep.mubr.f32.mxu0 0.0
    %346 = vmatmul.mubr.f32.gmra.mrb[0].mxu0 %v279
    %v347 = vpop.f32.mrb[0].mxu0
    %v348 = vadd.f32 0.0, %v347
    %v349 = vpop.f32.mrb[0].mxu0
    %350 = vdwg.mxu0
    %v352 = vrot.slane %v348, 7
    %v354 = vadd.f32 %v170, %v352
    %v355 = vxor.u32 %v354, 2147483648
    %v356 = vmul.f32 %v355, 1.442695
    %v357 = vpow.pop %v356
    %v358 = vadd.f32 %v357, 1.0
    %v359 = vrcp.pop %v358
    %v360 = vmul.f32 1.0, %v359
    %v361 = vtanh.pop %v354
    %v363 = vrot.slane %v269, 7
    %v365 = vmul.f32 %v360, %v363
    %367 = vrot.lane.b32.xlu0 %v361, 64
    %v368 = vpop.permute.xlu0 %367
    %v370 = vmul.f32 %v360, %v368
    %372 = vrot.lane.b32.xlu0 %v370, 32
    %v373 = vpop.permute.xlu0 %372
    %v375 = vadd.f32 %v365, %v373
    %v376 = vtanh.pop %v375
    %378 = vrot.lane.b32.xlu0 %v376, 64
    %v379 = vpop.permute.xlu0 %378
    %v381 = vmul.f32 %v360, %v379
    %v383 = vrot.slane %v381, 1
    %384 = vrot.lane.b32.xlu0 %v383, 32
    %v385 = vpop.permute.xlu0 %384
    %v386 = vsel %vm177, %v385, 0
    %388 = vmatprep.subr.mxu0 0.0
    %389 = vmatpush1.msra.mxu0 %v173
    %390 = vmatprep.subr.mxu0 0.0
    %391 = vmatpush1.msra.mxu0 %v174
    %392 = vmatprep.subr.mxu0 0.0
    %393 = vmatpush1.msra.mxu0 %v175
    %394 = vmatprep.subr.mxu0 0.0
    %395 = vmatpush1.msra.mxu0 %v176
    %396 = vmatprep.subr.mxu0 0.0
    %397 = vmatpush1.msra.mxu0 0.0
    %398 = vmatprep.subr.mxu0 0.0
    %399 = vmatpush1.msra.mxu0 0.0
    %400 = vmatprep.subr.mxu0 0.0
    %401 = vmatpush1.msra.mxu0 0.0
    %402 = vmatprep.subr.mxu0 0.0
    %403 = vmatpush1.msra.mxu0 0.0
    %404 = vmatprep.subr.mxu0 0.0
    %405 = vmatpush1.msra.mxu0 0.0
    %406 = vmatprep.subr.mxu0 0.0
    %407 = vmatpush1.msra.mxu0 0.0
    %408 = vmatprep.subr.mxu0 0.0
    %409 = vmatpush1.msra.mxu0 0.0
    %410 = vmatprep.subr.mxu0 0.0
    %411 = vmatpush1.msra.mxu0 0.0
    %412 = vmatprep.subr.mxu0 0.0
    %413 = vmatpush1.msra.mxu0 0.0
    %414 = vmatprep.subr.mxu0 0.0
    %415 = vmatpush1.msra.mxu0 0.0
    %416 = vmatprep.subr.mxu0 0.0
    %417 = vmatpush1.msra.mxu0 0.0
    %418 = vmatprep.subr.mxu0 0.0
    %419 = vmatpush1.msra.mxu0 0.0
    %420 = vmatprep.subr.mxu0 0.0
    %421 = vmatpush1.msra.mxu0 0.0
    %422 = vmatprep.subr.mxu0 0.0
    %423 = vmatpush1.msra.mxu0 0.0
    %424 = vmatprep.subr.mxu0 0.0
    %425 = vmatpush1.msra.mxu0 0.0
    %426 = vmatprep.subr.mxu0 0.0
    %427 = vmatpush1.msra.mxu0 0.0
    %428 = vmatprep.subr.mxu0 0.0
    %429 = vmatpush1.msra.mxu0 0.0
    %430 = vmatprep.subr.mxu0 0.0
    %431 = vmatpush1.msra.mxu0 0.0
    %432 = vmatprep.subr.mxu0 0.0
    %433 = vmatpush1.msra.mxu0 0.0
    %434 = vmatprep.subr.mxu0 0.0
    %435 = vmatpush1.msra.mxu0 0.0
    %436 = vmatprep.subr.mxu0 0.0
    %437 = vmatpush1.msra.mxu0 0.0
    %438 = vmatprep.subr.mxu0 0.0
    %439 = vmatpush1.msra.mxu0 0.0
    %440 = vmatprep.subr.mxu0 0.0
    %441 = vmatpush1.msra.mxu0 0.0
    %442 = vmatprep.subr.mxu0 0.0
    %443 = vmatpush1.msra.mxu0 0.0
    %444 = vmatprep.subr.mxu0 0.0
    %445 = vmatpush1.msra.mxu0 0.0
    %446 = vmatprep.subr.mxu0 0.0
    %447 = vmatpush1.msra.mxu0 0.0
    %448 = vmatprep.subr.mxu0 0.0
    %449 = vmatpush1.msra.mxu0 0.0
    %450 = vmatprep.subr.mxu0 0.0
    %451 = vmatpush1.msra.mxu0 0.0
    %452 = vmatprep.mubr.f32.mxu0 0.0
    %453 = vmatmul.mubr.f32.gmra.mrb[0].mxu0 %v386
    %v454 = vpop.f32.mrb[0].mxu0
    %v455 = vadd.f32 0.0, %v454
    %v456 = vpop.f32.mrb[0].mxu0
    %457 = vdwg.mxu0
    %v459 = vrot.slane %v455, 6
    %v461 = vadd.f32 %v170, %v459
    %v462 = vxor.u32 %v461, 2147483648
    %v463 = vmul.f32 %v462, 1.442695
    %v464 = vpow.pop %v463
    %v465 = vadd.f32 %v464, 1.0
    %v466 = vrcp.pop %v465
    %v467 = vmul.f32 1.0, %v466
    %v468 = vtanh.pop %v461
    %v470 = vrot.slane %v375, 7
    %v472 = vmul.f32 %v467, %v470
    %474 = vrot.lane.b32.xlu0 %v468, 64
    %v475 = vpop.permute.xlu0 %474
    %v477 = vmul.f32 %v467, %v475
    %479 = vrot.lane.b32.xlu0 %v477, 32
    %v480 = vpop.permute.xlu0 %479
    %v482 = vadd.f32 %v472, %v480
    %v483 = vtanh.pop %v482
    %485 = vrot.lane.b32.xlu0 %v483, 64
    %v486 = vpop.permute.xlu0 %485
    %v488 = vmul.f32 %v467, %v486
    %v490 = vrot.slane %v488, 2
    %491 = vrot.lane.b32.xlu0 %v490, 32
    %v492 = vpop.permute.xlu0 %491
    %v493 = vsel %vm177, %v492, 0
    %495 = vmatprep.subr.mxu0 0.0
    %496 = vmatpush1.msra.mxu0 %v173
    %497 = vmatprep.subr.mxu0 0.0
    %498 = vmatpush1.msra.mxu0 %v174
    %499 = vmatprep.subr.mxu0 0.0
    %500 = vmatpush1.msra.mxu0 %v175
    %501 = vmatprep.subr.mxu0 0.0
    %502 = vmatpush1.msra.mxu0 %v176
    %503 = vmatprep.subr.mxu0 0.0
    %504 = vmatpush1.msra.mxu0 0.0
    %505 = vmatprep.subr.mxu0 0.0
    %506 = vmatpush1.msra.mxu0 0.0
    %507 = vmatprep.subr.mxu0 0.0
    %508 = vmatpush1.msra.mxu0 0.0
    %509 = vmatprep.subr.mxu0 0.0
    %510 = vmatpush1.msra.mxu0 0.0
    %511 = vmatprep.subr.mxu0 0.0
    %512 = vmatpush1.msra.mxu0 0.0
    %513 = vmatprep.subr.mxu0 0.0
    %514 = vmatpush1.msra.mxu0 0.0
    %515 = vmatprep.subr.mxu0 0.0
    %516 = vmatpush1.msra.mxu0 0.0
    %517 = vmatprep.subr.mxu0 0.0
    %518 = vmatpush1.msra.mxu0 0.0
    %519 = vmatprep.subr.mxu0 0.0
    %520 = vmatpush1.msra.mxu0 0.0
    %521 = vmatprep.subr.mxu0 0.0
    %522 = vmatpush1.msra.mxu0 0.0
    %523 = vmatprep.subr.mxu0 0.0
    %524 = vmatpush1.msra.mxu0 0.0
    %525 = vmatprep.subr.mxu0 0.0
    %526 = vmatpush1.msra.mxu0 0.0
    %527 = vmatprep.subr.mxu0 0.0
    %528 = vmatpush1.msra.mxu0 0.0
    %529 = vmatprep.subr.mxu0 0.0
    %530 = vmatpush1.msra.mxu0 0.0
    %531 = vmatprep.subr.mxu0 0.0
    %532 = vmatpush1.msra.mxu0 0.0
    %533 = vmatprep.subr.mxu0 0.0
    %534 = vmatpush1.msra.mxu0 0.0
    %535 = vmatprep.subr.mxu0 0.0
    %536 = vmatpush1.msra.mxu0 0.0
    %537 = vmatprep.subr.mxu0 0.0
    %538 = vmatpush1.msra.mxu0 0.0
    %539 = vmatprep.subr.mxu0 0.0
    %540 = vmatpush1.msra.mxu0 0.0
    %541 = vmatprep.subr.mxu0 0.0
    %542 = vmatpush1.msra.mxu0 0.0
    %543 = vmatprep.subr.mxu0 0.0
    %544 = vmatpush1.msra.mxu0 0.0
    %545 = vmatprep.subr.mxu0 0.0
    %546 = vmatpush1.msra.mxu0 0.0
    %547 = vmatprep.subr.mxu0 0.0
    %548 = vmatpush1.msra.mxu0 0.0
    %549 = vmatprep.subr.mxu0 0.0
    %550 = vmatpush1.msra.mxu0 0.0
    %551 = vmatprep.subr.mxu0 0.0
    %552 = vmatpush1.msra.mxu0 0.0
    %553 = vmatprep.subr.mxu0 0.0
    %554 = vmatpush1.msra.mxu0 0.0
    %555 = vmatprep.subr.mxu0 0.0
    %556 = vmatpush1.msra.mxu0 0.0
    %557 = vmatprep.subr.mxu0 0.0
    %558 = vmatpush1.msra.mxu0 0.0
    %559 = vmatprep.mubr.f32.mxu0 0.0
    %560 = vmatmul.mubr.f32.gmra.mrb[0].mxu0 %v493
    %v561 = vpop.f32.mrb[0].mxu0
    %v562 = vadd.f32 0.0, %v561
    %v563 = vpop.f32.mrb[0].mxu0
    %564 = vdwg.mxu0
    %v566 = vrot.slane %v562, 5
    %v568 = vadd.f32 %v170, %v566
    %v569 = vxor.u32 %v568, 2147483648
    %v570 = vmul.f32 %v569, 1.442695
    %v571 = vpow.pop %v570
    %v572 = vadd.f32 %v571, 1.0
    %v573 = vrcp.pop %v572
    %v574 = vmul.f32 1.0, %v573
    %v575 = vtanh.pop %v568
    %v577 = vrot.slane %v482, 7
    %v579 = vmul.f32 %v574, %v577
    %581 = vrot.lane.b32.xlu0 %v575, 64
    %v582 = vpop.permute.xlu0 %581
    %v584 = vmul.f32 %v574, %v582
    %586 = vrot.lane.b32.xlu0 %v584, 32
    %v587 = vpop.permute.xlu0 %586
    %v589 = vadd.f32 %v579, %v587
    %v590 = vtanh.pop %v589
    %592 = vrot.lane.b32.xlu0 %v590, 64
    %v593 = vpop.permute.xlu0 %592
    %v595 = vmul.f32 %v574, %v593
    %v597 = vrot.slane %v595, 3
    %598 = vrot.lane.b32.xlu0 %v597, 32
    %v599 = vpop.permute.xlu0 %598
    %v600 = vsel %vm177, %v599, 0
    %602 = vmatprep.subr.mxu0 0.0
    %603 = vmatpush1.msra.mxu0 %v173
    %604 = vmatprep.subr.mxu0 0.0
    %605 = vmatpush1.msra.mxu0 %v174
    %606 = vmatprep.subr.mxu0 0.0
    %607 = vmatpush1.msra.mxu0 %v175
    %608 = vmatprep.subr.mxu0 0.0
    %609 = vmatpush1.msra.mxu0 %v176
    %610 = vmatprep.subr.mxu0 0.0
    %611 = vmatpush1.msra.mxu0 0.0
    %612 = vmatprep.subr.mxu0 0.0
    %613 = vmatpush1.msra.mxu0 0.0
    %614 = vmatprep.subr.mxu0 0.0
    %615 = vmatpush1.msra.mxu0 0.0
    %616 = vmatprep.subr.mxu0 0.0
    %617 = vmatpush1.msra.mxu0 0.0
    %618 = vmatprep.subr.mxu0 0.0
    %619 = vmatpush1.msra.mxu0 0.0
    %620 = vmatprep.subr.mxu0 0.0
    %621 = vmatpush1.msra.mxu0 0.0
    %622 = vmatprep.subr.mxu0 0.0
    %623 = vmatpush1.msra.mxu0 0.0
    %624 = vmatprep.subr.mxu0 0.0
    %625 = vmatpush1.msra.mxu0 0.0
    %626 = vmatprep.subr.mxu0 0.0
    %627 = vmatpush1.msra.mxu0 0.0
    %628 = vmatprep.subr.mxu0 0.0
    %629 = vmatpush1.msra.mxu0 0.0
    %630 = vmatprep.subr.mxu0 0.0
    %631 = vmatpush1.msra.mxu0 0.0
    %632 = vmatprep.subr.mxu0 0.0
    %633 = vmatpush1.msra.mxu0 0.0
    %634 = vmatprep.subr.mxu0 0.0
    %635 = vmatpush1.msra.mxu0 0.0
    %636 = vmatprep.subr.mxu0 0.0
    %637 = vmatpush1.msra.mxu0 0.0
    %638 = vmatprep.subr.mxu0 0.0
    %639 = vmatpush1.msra.mxu0 0.0
    %640 = vmatprep.subr.mxu0 0.0
    %641 = vmatpush1.msra.mxu0 0.0
    %642 = vmatprep.subr.mxu0 0.0
    %643 = vmatpush1.msra.mxu0 0.0
    %644 = vmatprep.subr.mxu0 0.0
    %645 = vmatpush1.msra.mxu0 0.0
    %646 = vmatprep.subr.mxu0 0.0
    %647 = vmatpush1.msra.mxu0 0.0
    %648 = vmatprep.subr.mxu0 0.0
    %649 = vmatpush1.msra.mxu0 0.0
    %650 = vmatprep.subr.mxu0 0.0
    %651 = vmatpush1.msra.mxu0 0.0
    %652 = vmatprep.subr.mxu0 0.0
    %653 = vmatpush1.msra.mxu0 0.0
    %654 = vmatprep.subr.mxu0 0.0
    %655 = vmatpush1.msra.mxu0 0.0
    %656 = vmatprep.subr.mxu0 0.0
    %657 = vmatpush1.msra.mxu0 0.0
    %658 = vmatprep.subr.mxu0 0.0
    %659 = vmatpush1.msra.mxu0 0.0
    %660 = vmatprep.subr.mxu0 0.0
    %661 = vmatpush1.msra.mxu0 0.0
    %662 = vmatprep.subr.mxu0 0.0
    %663 = vmatpush1.msra.mxu0 0.0
    %664 = vmatprep.subr.mxu0 0.0
    %665 = vmatpush1.msra.mxu0 0.0
    %666 = vmatprep.mubr.f32.mxu0 0.0
    %667 = vmatmul.mubr.f32.gmra.mrb[0].mxu0 %v600
    %v668 = vpop.f32.mrb[0].mxu0
    %v669 = vadd.f32 0.0, %v668
    %v670 = vpop.f32.mrb[0].mxu0
    %671 = vdwg.mxu0
    %v673 = vrot.slane %v669, 4
    %v675 = vadd.f32 %v170, %v673
    %v676 = vxor.u32 %v675, 2147483648
    %v677 = vmul.f32 %v676, 1.442695
    %v678 = vpow.pop %v677
    %v679 = vadd.f32 %v678, 1.0
    %v680 = vrcp.pop %v679
    %v681 = vmul.f32 1.0, %v680
    %v682 = vtanh.pop %v675
    %v684 = vrot.slane %v589, 7
    %v686 = vmul.f32 %v681, %v684
    %688 = vrot.lane.b32.xlu0 %v682, 64
    %v689 = vpop.permute.xlu0 %688
    %v691 = vmul.f32 %v681, %v689
    %693 = vrot.lane.b32.xlu0 %v691, 32
    %v694 = vpop.permute.xlu0 %693
    %v696 = vadd.f32 %v686, %v694
    %v697 = vtanh.pop %v696
    %699 = vrot.lane.b32.xlu0 %v697, 64
    %v700 = vpop.permute.xlu0 %699
    %v702 = vmul.f32 %v681, %v700
    %v704 = vrot.slane %v702, 4
    %705 = vrot.lane.b32.xlu0 %v704, 32
    %v706 = vpop.permute.xlu0 %705
    %v707 = vsel %vm177, %v706, 0
    %709 = vmatprep.subr.mxu0 0.0
    %710 = vmatpush1.msra.mxu0 %v173
    %711 = vmatprep.subr.mxu0 0.0
    %712 = vmatpush1.msra.mxu0 %v174
    %713 = vmatprep.subr.mxu0 0.0
    %714 = vmatpush1.msra.mxu0 %v175
    %715 = vmatprep.subr.mxu0 0.0
    %716 = vmatpush1.msra.mxu0 %v176
    %717 = vmatprep.subr.mxu0 0.0
    %718 = vmatpush1.msra.mxu0 0.0
    %719 = vmatprep.subr.mxu0 0.0
    %720 = vmatpush1.msra.mxu0 0.0
    %721 = vmatprep.subr.mxu0 0.0
    %722 = vmatpush1.msra.mxu0 0.0
    %723 = vmatprep.subr.mxu0 0.0
    %724 = vmatpush1.msra.mxu0 0.0
    %725 = vmatprep.subr.mxu0 0.0
    %726 = vmatpush1.msra.mxu0 0.0
    %727 = vmatprep.subr.mxu0 0.0
    %728 = vmatpush1.msra.mxu0 0.0
    %729 = vmatprep.subr.mxu0 0.0
    %730 = vmatpush1.msra.mxu0 0.0
    %731 = vmatprep.subr.mxu0 0.0
    %732 = vmatpush1.msra.mxu0 0.0
    %733 = vmatprep.subr.mxu0 0.0
    %734 = vmatpush1.msra.mxu0 0.0
    %735 = vmatprep.subr.mxu0 0.0
    %736 = vmatpush1.msra.mxu0 0.0
    %737 = vmatprep.subr.mxu0 0.0
    %738 = vmatpush1.msra.mxu0 0.0
    %739 = vmatprep.subr.mxu0 0.0
    %740 = vmatpush1.msra.mxu0 0.0
    %741 = vmatprep.subr.mxu0 0.0
    %742 = vmatpush1.msra.mxu0 0.0
    %743 = vmatprep.subr.mxu0 0.0
    %744 = vmatpush1.msra.mxu0 0.0
    %745 = vmatprep.subr.mxu0 0.0
    %746 = vmatpush1.msra.mxu0 0.0
    %747 = vmatprep.subr.mxu0 0.0
    %748 = vmatpush1.msra.mxu0 0.0
    %749 = vmatprep.subr.mxu0 0.0
    %750 = vmatpush1.msra.mxu0 0.0
    %751 = vmatprep.subr.mxu0 0.0
    %752 = vmatpush1.msra.mxu0 0.0
    %753 = vmatprep.subr.mxu0 0.0
    %754 = vmatpush1.msra.mxu0 0.0
    %755 = vmatprep.subr.mxu0 0.0
    %756 = vmatpush1.msra.mxu0 0.0
    %757 = vmatprep.subr.mxu0 0.0
    %758 = vmatpush1.msra.mxu0 0.0
    %759 = vmatprep.subr.mxu0 0.0
    %760 = vmatpush1.msra.mxu0 0.0
    %761 = vmatprep.subr.mxu0 0.0
    %762 = vmatpush1.msra.mxu0 0.0
    %763 = vmatprep.subr.mxu0 0.0
    %764 = vmatpush1.msra.mxu0 0.0
    %765 = vmatprep.subr.mxu0 0.0
    %766 = vmatpush1.msra.mxu0 0.0
    %767 = vmatprep.subr.mxu0 0.0
    %768 = vmatpush1.msra.mxu0 0.0
    %769 = vmatprep.subr.mxu0 0.0
    %770 = vmatpush1.msra.mxu0 0.0
    %771 = vmatprep.subr.mxu0 0.0
    %772 = vmatpush1.msra.mxu0 0.0
    %773 = vmatprep.mubr.f32.mxu0 0.0
    %774 = vmatmul.mubr.f32.gmra.mrb[0].mxu0 %v707
    %v775 = vpop.f32.mrb[0].mxu0
    %v776 = vadd.f32 0.0, %v775
    %v777 = vpop.f32.mrb[0].mxu0
    %778 = vdwg.mxu0
    %v780 = vrot.slane %v776, 3
    %v782 = vadd.f32 %v170, %v780
    %v783 = vxor.u32 %v782, 2147483648
    %v784 = vmul.f32 %v783, 1.442695
    %v785 = vpow.pop %v784
    %v786 = vadd.f32 %v785, 1.0
    %v787 = vrcp.pop %v786
    %v788 = vmul.f32 1.0, %v787
    %v789 = vtanh.pop %v782
    %v791 = vrot.slane %v696, 7
    %v793 = vmul.f32 %v788, %v791
    %795 = vrot.lane.b32.xlu0 %v789, 64
    %v796 = vpop.permute.xlu0 %795
    %v798 = vmul.f32 %v788, %v796
    %800 = vrot.lane.b32.xlu0 %v798, 32
    %v801 = vpop.permute.xlu0 %800
    %v803 = vadd.f32 %v793, %v801
    %v804 = vtanh.pop %v803
    %806 = vrot.lane.b32.xlu0 %v804, 64
    %v807 = vpop.permute.xlu0 %806
    %v809 = vmul.f32 %v788, %v807
    %v811 = vrot.slane %v809, 5
    %812 = vrot.lane.b32.xlu0 %v811, 32
    %v813 = vpop.permute.xlu0 %812
    %v814 = vsel %vm177, %v813, 0
    %816 = vmatprep.subr.mxu0 0.0
    %817 = vmatpush1.msra.mxu0 %v173
    %818 = vmatprep.subr.mxu0 0.0
    %819 = vmatpush1.msra.mxu0 %v174
    %820 = vmatprep.subr.mxu0 0.0
    %821 = vmatpush1.msra.mxu0 %v175
    %822 = vmatprep.subr.mxu0 0.0
    %823 = vmatpush1.msra.mxu0 %v176
    %824 = vmatprep.subr.mxu0 0.0
    %825 = vmatpush1.msra.mxu0 0.0
    %826 = vmatprep.subr.mxu0 0.0
    %827 = vmatpush1.msra.mxu0 0.0
    %828 = vmatprep.subr.mxu0 0.0
    %829 = vmatpush1.msra.mxu0 0.0
    %830 = vmatprep.subr.mxu0 0.0
    %831 = vmatpush1.msra.mxu0 0.0
    %832 = vmatprep.subr.mxu0 0.0
    %833 = vmatpush1.msra.mxu0 0.0
    %834 = vmatprep.subr.mxu0 0.0
    %835 = vmatpush1.msra.mxu0 0.0
    %836 = vmatprep.subr.mxu0 0.0
    %837 = vmatpush1.msra.mxu0 0.0
    %838 = vmatprep.subr.mxu0 0.0
    %839 = vmatpush1.msra.mxu0 0.0
    %840 = vmatprep.subr.mxu0 0.0
    %841 = vmatpush1.msra.mxu0 0.0
    %842 = vmatprep.subr.mxu0 0.0
    %843 = vmatpush1.msra.mxu0 0.0
    %844 = vmatprep.subr.mxu0 0.0
    %845 = vmatpush1.msra.mxu0 0.0
    %846 = vmatprep.subr.mxu0 0.0
    %847 = vmatpush1.msra.mxu0 0.0
    %848 = vmatprep.subr.mxu0 0.0
    %849 = vmatpush1.msra.mxu0 0.0
    %850 = vmatprep.subr.mxu0 0.0
    %851 = vmatpush1.msra.mxu0 0.0
    %852 = vmatprep.subr.mxu0 0.0
    %853 = vmatpush1.msra.mxu0 0.0
    %854 = vmatprep.subr.mxu0 0.0
    %855 = vmatpush1.msra.mxu0 0.0
    %856 = vmatprep.subr.mxu0 0.0
    %857 = vmatpush1.msra.mxu0 0.0
    %858 = vmatprep.subr.mxu0 0.0
    %859 = vmatpush1.msra.mxu0 0.0
    %860 = vmatprep.subr.mxu0 0.0
    %861 = vmatpush1.msra.mxu0 0.0
    %862 = vmatprep.subr.mxu0 0.0
    %863 = vmatpush1.msra.mxu0 0.0
    %864 = vmatprep.subr.mxu0 0.0
    %865 = vmatpush1.msra.mxu0 0.0
    %866 = vmatprep.subr.mxu0 0.0
    %867 = vmatpush1.msra.mxu0 0.0
    %868 = vmatprep.subr.mxu0 0.0
    %869 = vmatpush1.msra.mxu0 0.0
    %870 = vmatprep.subr.mxu0 0.0
    %871 = vmatpush1.msra.mxu0 0.0
    %872 = vmatprep.subr.mxu0 0.0
    %873 = vmatpush1.msra.mxu0 0.0
    %874 = vmatprep.subr.mxu0 0.0
    %875 = vmatpush1.msra.mxu0 0.0
    %876 = vmatprep.subr.mxu0 0.0
    %877 = vmatpush1.msra.mxu0 0.0
    %878 = vmatprep.subr.mxu0 0.0
    %879 = vmatpush1.msra.mxu0 0.0
    %880 = vmatprep.mubr.f32.mxu0 0.0
    %881 = vmatmul.mubr.f32.gmra.mrb[0].mxu0 %v814
    %v882 = vpop.f32.mrb[0].mxu0
    %v883 = vadd.f32 0.0, %v882
    %v884 = vpop.f32.mrb[0].mxu0
    %885 = vdwg.mxu0
    %v887 = vrot.slane %v883, 2
    %v889 = vadd.f32 %v170, %v887
    %v890 = vxor.u32 %v889, 2147483648
    %v891 = vmul.f32 %v890, 1.442695
    %v892 = vpow.pop %v891
    %v893 = vadd.f32 %v892, 1.0
    %v894 = vrcp.pop %v893
    %v895 = vmul.f32 1.0, %v894
    %v896 = vtanh.pop %v889
    %v898 = vrot.slane %v803, 7
    %v900 = vmul.f32 %v895, %v898
    %902 = vrot.lane.b32.xlu0 %v896, 64
    %v903 = vpop.permute.xlu0 %902
    %v905 = vmul.f32 %v895, %v903
    %907 = vrot.lane.b32.xlu0 %v905, 32
    %v908 = vpop.permute.xlu0 %907
    %v910 = vadd.f32 %v900, %v908
    %v911 = vtanh.pop %v910
    %913 = vrot.lane.b32.xlu0 %v911, 64
    %v914 = vpop.permute.xlu0 %913
    %v916 = vmul.f32 %v895, %v914
    %v918 = vrot.slane %v916, 6
    %919 = vrot.lane.b32.xlu0 %v918, 32
    %v920 = vpop.permute.xlu0 %919
    %v921 = vsel %vm177, %v920, 0
    %923 = vmatprep.subr.mxu0 0.0
    %924 = vmatpush1.msra.mxu0 %v173
    %925 = vmatprep.subr.mxu0 0.0
    %926 = vmatpush1.msra.mxu0 %v174
    %927 = vmatprep.subr.mxu0 0.0
    %928 = vmatpush1.msra.mxu0 %v175
    %929 = vmatprep.subr.mxu0 0.0
    %930 = vmatpush1.msra.mxu0 %v176
    %931 = vmatprep.subr.mxu0 0.0
    %932 = vmatpush1.msra.mxu0 0.0
    %933 = vmatprep.subr.mxu0 0.0
    %934 = vmatpush1.msra.mxu0 0.0
    %935 = vmatprep.subr.mxu0 0.0
    %936 = vmatpush1.msra.mxu0 0.0
    %937 = vmatprep.subr.mxu0 0.0
    %938 = vmatpush1.msra.mxu0 0.0
    %939 = vmatprep.subr.mxu0 0.0
    %940 = vmatpush1.msra.mxu0 0.0
    %941 = vmatprep.subr.mxu0 0.0
    %942 = vmatpush1.msra.mxu0 0.0
    %943 = vmatprep.subr.mxu0 0.0
    %944 = vmatpush1.msra.mxu0 0.0
    %945 = vmatprep.subr.mxu0 0.0
    %946 = vmatpush1.msra.mxu0 0.0
    %947 = vmatprep.subr.mxu0 0.0
    %948 = vmatpush1.msra.mxu0 0.0
    %949 = vmatprep.subr.mxu0 0.0
    %950 = vmatpush1.msra.mxu0 0.0
    %951 = vmatprep.subr.mxu0 0.0
    %952 = vmatpush1.msra.mxu0 0.0
    %953 = vmatprep.subr.mxu0 0.0
    %954 = vmatpush1.msra.mxu0 0.0
    %955 = vmatprep.subr.mxu0 0.0
    %956 = vmatpush1.msra.mxu0 0.0
    %957 = vmatprep.subr.mxu0 0.0
    %958 = vmatpush1.msra.mxu0 0.0
    %959 = vmatprep.subr.mxu0 0.0
    %960 = vmatpush1.msra.mxu0 0.0
    %961 = vmatprep.subr.mxu0 0.0
    %962 = vmatpush1.msra.mxu0 0.0
    %963 = vmatprep.subr.mxu0 0.0
    %964 = vmatpush1.msra.mxu0 0.0
    %965 = vmatprep.subr.mxu0 0.0
    %966 = vmatpush1.msra.mxu0 0.0
    %967 = vmatprep.subr.mxu0 0.0
    %968 = vmatpush1.msra.mxu0 0.0
    %969 = vmatprep.subr.mxu0 0.0
    %970 = vmatpush1.msra.mxu0 0.0
    %971 = vmatprep.subr.mxu0 0.0
    %972 = vmatpush1.msra.mxu0 0.0
    %973 = vmatprep.subr.mxu0 0.0
    %974 = vmatpush1.msra.mxu0 0.0
    %975 = vmatprep.subr.mxu0 0.0
    %976 = vmatpush1.msra.mxu0 0.0
    %977 = vmatprep.subr.mxu0 0.0
    %978 = vmatpush1.msra.mxu0 0.0
    %979 = vmatprep.subr.mxu0 0.0
    %980 = vmatpush1.msra.mxu0 0.0
    %981 = vmatprep.subr.mxu0 0.0
    %982 = vmatpush1.msra.mxu0 0.0
    %983 = vmatprep.subr.mxu0 0.0
    %984 = vmatpush1.msra.mxu0 0.0
    %985 = vmatprep.subr.mxu0 0.0
    %986 = vmatpush1.msra.mxu0 0.0
    %987 = vmatprep.mubr.f32.mxu0 0.0
    %988 = vmatmul.mubr.f32.gmra.mrb[0].mxu0 %v921
    %v989 = vpop.f32.mrb[0].mxu0
    %v990 = vadd.f32 0.0, %v989
    %v991 = vpop.f32.mrb[0].mxu0
    %992 = vdwg.mxu0
    %v994 = vrot.slane %v990, 1
    %v996 = vadd.f32 %v170, %v994
    %v997 = vxor.u32 %v996, 2147483648
    %v998 = vmul.f32 %v997, 1.442695
    %v999 = vpow.pop %v998
    %v1000 = vadd.f32 %v999, 1.0
    %v1001 = vrcp.pop %v1000
    %v1002 = vmul.f32 1.0, %v1001
    %v1003 = vtanh.pop %v996
    %v1005 = vrot.slane %v910, 7
    %v1007 = vmul.f32 %v1002, %v1005
    %1009 = vrot.lane.b32.xlu0 %v1003, 64
    %v1010 = vpop.permute.xlu0 %1009
    %v1012 = vmul.f32 %v1002, %v1010
    %1014 = vrot.lane.b32.xlu0 %v1012, 32
    %v1015 = vpop.permute.xlu0 %1014
    %v1017 = vadd.f32 %v1007, %v1015
    %v1018 = vtanh.pop %v1017
    %1020 = vrot.lane.b32.xlu0 %v1018, 64
    %v1021 = vpop.permute.xlu0 %1020
    %v1023 = vmul.f32 %v1002, %v1021
    %v1024 = vsel %vm76, %v275, %v381
    %v1025 = vsel %vm78, %v1024, %v488
    %v1026 = vsel %vm80, %v1025, %v595
    %v1027 = vsel %vm82, %v1026, %v702
    %v1028 = vsel %vm84, %v1027, %v809
    %v1029 = vsel %vm86, %v1028, %v916
    %v1030 = vsel %vm88, %v1029, %v1023
    %v1031 = vld [vmem:[%s5] sm:$0xff]
    %v1032 = vld [vmem:[%s5 + $0x8] sm:$0xff]
    %v1033 = vld [vmem:[%s5 + $0x10] sm:$0xff]
    %v1034 = vld [vmem:[%s5 + $0x18] sm:$0xff]
    %v1035 = vld [vmem:[%s6] sm:$0x1]
    %v1037 = vlaneseq
    %v1038 = vshrl.u32 %v1037, 7
    %v1039 = vsub.s32 0, %v1038
    %v1040 = vrot.slane %v1035, %v1039
    %1043 = vrot.lane.b32.xlu0 %v1030, 32
    %v1044 = vpop.permute.xlu0 %1043
    %v1045 = vsel %vm177, %v1044, 0
    %1047 = vmatprep.subr.mxu0 0.0
    %1048 = vmatpush1.msra.mxu0 %v1031
    %1049 = vmatprep.subr.mxu0 0.0
    %1050 = vmatpush1.msra.mxu0 %v1032
    %1051 = vmatprep.subr.mxu0 0.0
    %1052 = vmatpush1.msra.mxu0 %v1033
    %1053 = vmatprep.subr.mxu0 0.0
    %1054 = vmatpush1.msra.mxu0 %v1034
    %1055 = vmatprep.subr.mxu0 0.0
    %1056 = vmatpush1.msra.mxu0 0.0
    %1057 = vmatprep.subr.mxu0 0.0
    %1058 = vmatpush1.msra.mxu0 0.0
    %1059 = vmatprep.subr.mxu0 0.0
    %1060 = vmatpush1.msra.mxu0 0.0
    %1061 = vmatprep.subr.mxu0 0.0
    %1062 = vmatpush1.msra.mxu0 0.0
    %1063 = vmatprep.subr.mxu0 0.0
    %1064 = vmatpush1.msra.mxu0 0.0
    %1065 = vmatprep.subr.mxu0 0.0
    %1066 = vmatpush1.msra.mxu0 0.0
    %1067 = vmatprep.subr.mxu0 0.0
    %1068 = vmatpush1.msra.mxu0 0.0
    %1069 = vmatprep.subr.mxu0 0.0
    %1070 = vmatpush1.msra.mxu0 0.0
    %1071 = vmatprep.subr.mxu0 0.0
    %1072 = vmatpush1.msra.mxu0 0.0
    %1073 = vmatprep.subr.mxu0 0.0
    %1074 = vmatpush1.msra.mxu0 0.0
    %1075 = vmatprep.subr.mxu0 0.0
    %1076 = vmatpush1.msra.mxu0 0.0
    %1077 = vmatprep.subr.mxu0 0.0
    %1078 = vmatpush1.msra.mxu0 0.0
    %1079 = vmatprep.subr.mxu0 0.0
    %1080 = vmatpush1.msra.mxu0 0.0
    %1081 = vmatprep.subr.mxu0 0.0
    %1082 = vmatpush1.msra.mxu0 0.0
    %1083 = vmatprep.subr.mxu0 0.0
    %1084 = vmatpush1.msra.mxu0 0.0
    %1085 = vmatprep.subr.mxu0 0.0
    %1086 = vmatpush1.msra.mxu0 0.0
    %1087 = vmatprep.subr.mxu0 0.0
    %1088 = vmatpush1.msra.mxu0 0.0
    %1089 = vmatprep.subr.mxu0 0.0
    %1090 = vmatpush1.msra.mxu0 0.0
    %1091 = vmatprep.subr.mxu0 0.0
    %1092 = vmatpush1.msra.mxu0 0.0
    %1093 = vmatprep.subr.mxu0 0.0
    %1094 = vmatpush1.msra.mxu0 0.0
    %1095 = vmatprep.subr.mxu0 0.0
    %1096 = vmatpush1.msra.mxu0 0.0
    %1097 = vmatprep.subr.mxu0 0.0
    %1098 = vmatpush1.msra.mxu0 0.0
    %1099 = vmatprep.subr.mxu0 0.0
    %1100 = vmatpush1.msra.mxu0 0.0
    %1101 = vmatprep.subr.mxu0 0.0
    %1102 = vmatpush1.msra.mxu0 0.0
    %1103 = vmatprep.subr.mxu0 0.0
    %1104 = vmatpush1.msra.mxu0 0.0
    %1105 = vmatprep.subr.mxu0 0.0
    %1106 = vmatpush1.msra.mxu0 0.0
    %1107 = vmatprep.subr.mxu0 0.0
    %1108 = vmatpush1.msra.mxu0 0.0
    %1109 = vmatprep.subr.mxu0 0.0
    %1110 = vmatpush1.msra.mxu0 0.0
    %1111 = vmatprep.mubr.f32.mxu0 0.0
    %1112 = vmatmul.mubr.f32.gmra.mrb[0].mxu0 %v1045
    %v1113 = vpop.f32.mrb[0].mxu0
    %v1114 = vadd.f32 %v1040, %v1113
    %v1115 = vpop.f32.mrb[0].mxu0
    %1116 = vdwg.mxu0
    %1117 = vmax.xlane.f32.xlu0 %v1114
    %v1118 = vpop.xlane.xlu0 %1117
    %v1119 = vsub.f32 %v1114, %v1118
    %v1120 = vmul.f32 %v1119, 1.442695
    %v1121 = vpow.pop %v1120
    %1122 = vadd.xlane.f32.xlu0 %v1121
    %v1123 = vpop.xlane.xlu0 %1122
    %v1124 = vlog2.pop %v1123
    %v1125 = vmul.f32 %v1124, 0.6931472
    %v1126 = vadd.f32 %v1125, %v1118
    %v1127 = vsub.f32 %v1114, %v1126
    %1128 = vst [vmem:[#allocation4] sm:$0xff] %v1127
    // Predicated region
    $region26: #{lstm_tagger_forward.1} parent=1 // pred_check
      _
    $region27: #{lstm_tagger_forward.1} parent=1 // pred_check_branch
      %1130 = sbr.rel (0) target = $region29
    $region28: #{lstm_tagger_forward.1} parent=1 // pred_region
      %s1132 = ssub.s32 128, 128
      %1133 = vsyncadd [#allocation5], %s1132
      %s1135 = sshll.u32 [#allocation4], 4
      %s1136 = int_to_ptr.vmem [resolvable:$true] %s1135
      %1138 = dma.vmem_to_hbm [thread:$0]  %s1136, 128, %s7, [#allocation5]
    $region29: #{lstm_tagger_forward.1} parent=1 // pred_fallthru
      _
    // Predicated region
    $region30: #{lstm_tagger_forward.1} parent=1 // pred_check
      _
    $region31: #{lstm_tagger_forward.1} parent=1 // pred_check_branch
      %1140 = sbr.rel (0) target = $region33
    $region32: #{lstm_tagger_forward.1} parent=1 // pred_region
      %1141 = dma.done [#allocation5], 128
    $region33: #{lstm_tagger_forward.1} parent=1 // pred_fallthru
      _
    %1142 = vsyncpa [#allocation5], 1

</llo_original>
